<compile_context>
chip_gen: v7x
topology: tpu7x:2x2x1
jax: 0.10.0
libtpu: 0.0.40
codegen_flags: <defaults>
</compile_context>

<pallas_src>
import jax
import jax.numpy as jnp
from jax.experimental import pallas as pl
from jax.experimental.pallas import tpu as pltpu


def copy_kernel(x_ref, o_ref):
    # Identity forward: load the VMEM tile and store it back out.
    o_ref[...] = x_ref[...]


def _lane_dense_shape(total):
    """Pick (rows, lanes) with lanes a large multiple of 128 dividing total."""
    for lanes in (1024, 512, 256, 128):
        if total % lanes == 0:
            return total // lanes, lanes
    return None


def my_model_forward(x, num_classes=None):
    """Pallas implementation of MyModel.forward (identity).

    num_classes is accepted for API parity with the PyTorch constructor but is
    unused, because the reference forward applies no parameters.
    """
    orig_shape = x.shape
    total = x.size
    itemsize = x.dtype.itemsize

    shape2d = _lane_dense_shape(total)
    if shape2d is None:
        # Odd total sizes: single full-extent block (always legal); this path
        # is only hit for tiny/irregular tensors.
        rows, lanes = 1, total
        flat = x.reshape(rows, lanes)
        tile_rows = rows
    else:
        rows, lanes = shape2d
        flat = x.reshape(rows, lanes)
        # Cap per-tile VMEM: in + out, each double-buffered -> 4 * TM * lanes * itemsize.
        # Keep ~8 MiB per tile set so it fits comfortably inside v7x's 32 MiB
        # scoped default (and trivially inside v5e/v6e's 128 MiB).
        vmem_budget = 8 * 1024 * 1024
        max_rows = max(8, vmem_budget // (4 * lanes * itemsize))
        tile_rows = min(rows, 512, max_rows)
        if tile_rows != rows:
            # Second-to-last block dim must be a multiple of 8 (or full extent).
            tile_rows = max(8, (tile_rows // 8) * 8)

    grid = (pl.cdiv(rows, tile_rows),)

    out_flat = pl.pallas_call(
        copy_kernel,
        out_shape=jax.ShapeDtypeStruct(flat.shape, flat.dtype),
        grid=grid,
        in_specs=[pl.BlockSpec((tile_rows, lanes), lambda i: (i, 0))],
        out_specs=pl.BlockSpec((tile_rows, lanes), lambda i: (i, 0)),
        # Identity: let XLA alias the output buffer onto the input so the
        # kernel degenerates to an aliased write instead of fresh HBM traffic.
        input_output_aliases={0: 0},
        compiler_params=pltpu.CompilerParams(
            # Row-tile axis is fully independent -> shardable across v7x's 2 TCs.
            dimension_semantics=("parallel",),
        ),
        cost_estimate=pl.CostEstimate(
            flops=0,
            transcendentals=0,
            bytes_accessed=2 * total * itemsize,
        ),
    )(flat)

    return out_flat.reshape(orig_shape)


if __name__ == "__main__":
    # TODO(synk): the reference module defines no layers/parameters; only the
    # identity forward pass is implementable. num_classes has no effect.
    num_classes = 10
    key = jax.random.PRNGKey(0)
    x = jax.random.normal(key, (2, 4, 16, 16), dtype=jnp.float32)

    y = my_model_forward(x, num_classes=num_classes)
    jax.block_until_ready(y)

    assert y.shape == x.shape and y.dtype == x.dtype
    assert bool(jnp.allclose(y, x))
    print("KERNEL_OK")
</pallas_src>

<mosaic_0001>
module attributes {stable_mosaic.version = 11 : i64} {
  func.func @copy_kernel(%arg0: i32, %arg1: memref<2x1024xf32, #tpu.memory_space<vmem>>, %arg2: memref<2x1024xf32, #tpu.memory_space<vmem>>) attributes {dimension_semantics = [#tpu.dimension_semantics<parallel>], iteration_bounds = array<i64: 1>, scalar_prefetch = 0 : i64, scratch_operands = 0 : i64, tpu.core_type = #tpu.core_type<tc>, window_params = [{transform_indices = @transform_0, window_bounds = array<i64: 2, 1024>}, {transform_indices = @transform_1, window_bounds = array<i64: 2, 1024>}]} {
    %c0 = arith.constant 0 : index
    %c0_0 = arith.constant 0 : index
    %0 = vector.load %arg1[%c0, %c0_0] : memref<2x1024xf32, #tpu.memory_space<vmem>>, vector<2x1024xf32>
    %c0_1 = arith.constant 0 : index
    %c0_2 = arith.constant 0 : index
    %1 = vector.load %arg2[%c0_1, %c0_2] : memref<2x1024xf32, #tpu.memory_space<vmem>>, vector<2x1024xf32>
    tpu.vector_store %arg2[%c0_1, %c0_2], %0 {strides = array<i32>} : memref<2x1024xf32, #tpu.memory_space<vmem>>, vector<2x1024xf32>,
    return
  }
  func.func @transform_0(%arg0: i32) -> (i32, i32) {
    %c0_i32 = arith.constant 0 : i32
    %c0_i32_0 = arith.constant 0 : i32
    return %arg0, %c0_i32 : i32, i32
  }
  func.func @transform_1(%arg0: i32) -> (i32, i32) {
    %c0_i32 = arith.constant 0 : i32
    %c0_i32_0 = arith.constant 0 : i32
    return %arg0, %c0_i32 : i32, i32
  }
}

</mosaic_0001>

<llo_original>
// kernel: tpu_custom_call.1
$region0: #{tpu_custom_call.1}
  #allocation0 [shape = 'u32[]', space=smem, size = 0x4, offset = 0x4, fixed_abs, tag = 'smem constant byte address 0x4 - core index']
  #allocation1 [shape = 'u32[144,128]{1,0:T(1,128)}', space=vmem, size = 0x12000, scoped, tag = 'internal scratch']
  %s0 = inlined_call_operand.hbm [shape: f32[2,1024], index: 0, kind: input, shape index: {}, may-alias: {0,1}]
  %s1 = inlined_call_operand.hbm [shape: f32[2,1024], index: 1, kind: output, shape index: {}, may-alias: {0,1}]
  %s2 = sld [smem:[#allocation0]]
  $region18: #{tpu_custom_call.1} parent=0
    _
  %s4 = ssub.s32 1, %s2
  %s5 = scalar_select 0, %s4, %s2
  $region1: #{tpu_custom_call.1} parent=0
    #allocation2 [shape = 'u8[8192]{0}', space=vmem, size = 0x2000, scoped, tag = 'input window, operand 0, single buffered']
    #allocation3 [shape = 's32[1]{0}', space=sflag, size = 0x4, scoped, tag = 'scoped memory for tpu_custom_call.1']
    #allocation4 [shape = 's32[1]{0}', space=sflag, size = 0x4, scoped, tag = 'scoped memory for tpu_custom_call.1']
    #allocation5 [shape = 'u8[8192]{0}', space=vmem, size = 0x2000, scoped, tag = 'output window, operand 0, single buffered']
    %6 = vsyncpa [#allocation3], 0
    %7 = vsyncpa [#allocation4], 0
    // Predicated region
    $region2: #{tpu_custom_call.1} parent=1 // pred_check
      _
    $region3: #{tpu_custom_call.1} parent=1 // pred_check_branch
      %9 = sbr.rel (0) target = $region5
    $region4: #{tpu_custom_call.1} parent=1 // pred_region
      %s11 = ssub.s32 256, 256
      %12 = vsyncadd [#allocation3], %s11
      %s14 = sshll.u32 [#allocation2], 4
      %s15 = int_to_ptr.vmem [resolvable:$true] %s14
      %17 = dma.hbm_to_vmem [thread:$0]  %s0, 256, %s15, [#allocation3]
    $region5: #{tpu_custom_call.1} parent=1 // pred_fallthru
      _
    // Predicated region
    $region6: #{tpu_custom_call.1} parent=1 // pred_check
      _
    $region7: #{tpu_custom_call.1} parent=1 // pred_check_branch
      %19 = sbr.rel (0) target = $region9
    $region8: #{tpu_custom_call.1} parent=1 // pred_region
      %20 = dma.done [#allocation3], 256
    $region9: #{tpu_custom_call.1} parent=1 // pred_fallthru
      _
    %v21 = vld [vmem:[#allocation2] sm:$0xff]
    %v22 = vld [vmem:[#allocation2 + $0x8] sm:$0xff]
    %23 = vst [vmem:[#allocation5] sm:$0xff] %v21
    %24 = vst [vmem:[#allocation5 + $0x8] sm:$0xff] %v22
    // Predicated region
    $region10: #{tpu_custom_call.1} parent=1 // pred_check
      _
    $region11: #{tpu_custom_call.1} parent=1 // pred_check_branch
      %26 = sbr.rel (0) target = $region13
    $region12: #{tpu_custom_call.1} parent=1 // pred_region
      %s28 = ssub.s32 256, 256
      %29 = vsyncadd [#allocation4], %s28
      %s31 = sshll.u32 [#allocation5], 4
      %s32 = int_to_ptr.vmem [resolvable:$true] %s31
      %34 = dma.vmem_to_hbm [thread:$0]  %s32, 256, %s1, [#allocation4]
    $region13: #{tpu_custom_call.1} parent=1 // pred_fallthru
      _
    // Predicated region
    $region14: #{tpu_custom_call.1} parent=1 // pred_check
      _
    $region15: #{tpu_custom_call.1} parent=1 // pred_check_branch
      %36 = sbr.rel (0) target = $region17
    $region16: #{tpu_custom_call.1} parent=1 // pred_region
      %37 = dma.done [#allocation4], 256
    $region17: #{tpu_custom_call.1} parent=1 // pred_fallthru
      _
    %38 = vsyncpa [#allocation3], 1
    %39 = vsyncpa [#allocation4], 1

</llo_original>
